<compile_context>
chip_gen: v6e
topology: v6e:2x2x1
jax: 0.10.0
libtpu: 0.0.40
codegen_flags: <defaults>
</compile_context>

<pallas_src>
import jax
import jax.numpy as jnp
from jax.experimental import pallas as pl
from jax.experimental.pallas import tpu as pltpu


# F.normalize(p=2, dim=1) uses eps=1e-12 on the norm; equivalently 1e-24 on the
# squared norm (identical for every non-degenerate row).
_EPS_SQ = 1e-24
_VMEM_LIMIT = 32 * 1024 * 1024  # raise v5e's 16 MiB default; matches v6e/v7x scoped default


def _l2_normalize_rows(y):
    sq = jnp.sum(y * y, axis=-1, keepdims=True)           # XLU row-reduce
    return y * jax.lax.rsqrt(jnp.maximum(sq, _EPS_SQ))     # rsqrt -> EUP slot


def _proj_norm_kernel(x_ref, w_ref, b_ref, o_ref):
    """Single modality: o = l2norm(x @ W + b) for one batch tile."""
    x = x_ref[...].astype(w_ref.dtype)                     # in-kernel cast (VPU), f32 from HBM
    y = jnp.dot(x, w_ref[...], preferred_element_type=jnp.float32) + b_ref[...]
    o_ref[...] = _l2_normalize_rows(y).astype(o_ref.dtype)


def _dual_proj_norm_kernel(xi_ref, wi_ref, bi_ref, xt_ref, wt_ref, bt_ref,
                           oi_ref, ot_ref):
    """Fused vision + text projection/normalize for one batch tile."""
    xi = xi_ref[...].astype(wi_ref.dtype)
    yi = jnp.dot(xi, wi_ref[...], preferred_element_type=jnp.float32) + bi_ref[...]
    oi_ref[...] = _l2_normalize_rows(yi).astype(oi_ref.dtype)

    xt = xt_ref[...].astype(wt_ref.dtype)
    yt = jnp.dot(xt, wt_ref[...], preferred_element_type=jnp.float32) + bt_ref[...]
    ot_ref[...] = _l2_normalize_rows(yt).astype(ot_ref.dtype)


def _round_up(x, m):
    return ((x + m - 1) // m) * m


def _choose_tiling(batch, tm_cap=1024):
    """Pick (tm, padded_batch): minimal padding, >=2 steps for big batches."""
    bp8 = _round_up(max(batch, 1), 8)
    if bp8 <= 64:
        # Tiny batch: single step, pad only up to the sublane multiple.
        return bp8, bp8
    # At least 2 grid steps (v7x 2-TC sharding + prefetch/writeback overlap);
    # grow toward 8 steps only while tiles stay >= 256 rows (per-step overhead).
    n = max(2, pl.cdiv(bp8, tm_cap))
    while n < 8 and pl.cdiv(bp8, n + 1) >= 256:
        n += 1
    tm = _round_up(pl.cdiv(bp8, n), 8)
    return tm, _round_up(bp8, tm)


def _pad_batch(x, bp):
    b = x.shape[0]
    return x if b == bp else jnp.pad(x, ((0, bp - b), (0, 0)))


def _prep_weight(w_t, compute_dtype):
    return w_t if w_t.dtype == compute_dtype else w_t.astype(compute_dtype)


def _prep_bias(b):
    b = b if b.dtype == jnp.float32 else b.astype(jnp.float32)
    return b if b.ndim == 2 else b.reshape(1, -1)


def project_and_normalize(features, weight_t, bias, *,
                          compute_dtype=jnp.bfloat16,
                          out_dtype=jnp.bfloat16, tm=None):
    """Single modality: features [B, H] f32, weight_t [H, P], bias [P] -> [B, P]."""
    B, H = features.shape
    H2, P = weight_t.shape
    assert H == H2
    if tm is None:
        tm, Bp = _choose_tiling(B)
    else:
        Bp = _round_up(_round_up(max(B, 1), 8), tm)

    x = _pad_batch(features, Bp)                 # f32 into the kernel; no HBM cast round trip
    w = _prep_weight(weight_t, compute_dtype)
    b2 = _prep_bias(bias)

    w_itm = jnp.dtype(compute_dtype).itemsize
    o_itm = jnp.dtype(out_dtype).itemsize
    cost = pl.CostEstimate(
        flops=2 * Bp * H * P,
        transcendentals=0,
        bytes_accessed=Bp * H * 4 + H * P * w_itm + 4 * P + Bp * P * o_itm,
    )

    out = pl.pallas_call(
        _proj_norm_kernel,
        out_shape=jax.ShapeDtypeStruct((Bp, P), out_dtype),
        grid=(Bp // tm,),
        in_specs=[
            pl.BlockSpec((tm, H), lambda i: (i, 0)),
            pl.BlockSpec((H, P), lambda i: (0, 0)),   # resident weight
            pl.BlockSpec((1, P), lambda i: (0, 0)),   # resident bias
        ],
        out_specs=pl.BlockSpec((tm, P), lambda i: (i, 0)),
        compiler_params=pltpu.CompilerParams(
            dimension_semantics=("parallel",),
            vmem_limit_bytes=_VMEM_LIMIT),
        cost_estimate=cost,
    )(x, w, b2)

    return out[:B] if Bp != B else out


def project_and_normalize_fused(img_features, vw_t, vb,
                                txt_features, tw_t, tb, *,
                                compute_dtype=jnp.bfloat16,
                                out_dtype=jnp.bfloat16, tm=None):
    """Fused dual-modality path (same batch size): one pallas_call for both."""
    Bi, Hv = img_features.shape
    Bt, Ht = txt_features.shape
    assert Bi == Bt, "fused path requires matching batch sizes"
    _, Pv = vw_t.shape
    _, Pt = tw_t.shape

    B = Bi
    if tm is None:
        tm, Bp = _choose_tiling(B)
    else:
        Bp = _round_up(_round_up(max(B, 1), 8), tm)

    xi = _pad_batch(img_features, Bp)
    xt = _pad_batch(txt_features, Bp)
    wi = _prep_weight(vw_t, compute_dtype)
    wt = _prep_weight(tw_t, compute_dtype)
    bi = _prep_bias(vb)
    bt = _prep_bias(tb)

    w_itm = jnp.dtype(compute_dtype).itemsize
    o_itm = jnp.dtype(out_dtype).itemsize
    cost = pl.CostEstimate(
        flops=2 * Bp * (Hv * Pv + Ht * Pt),
        transcendentals=0,
        bytes_accessed=(Bp * (Hv + Ht) * 4 + (Hv * Pv + Ht * Pt) * w_itm
                        + 4 * (Pv + Pt) + Bp * (Pv + Pt) * o_itm),
    )

    out_i, out_t = pl.pallas_call(
        _dual_proj_norm_kernel,
        out_shape=(jax.ShapeDtypeStruct((Bp, Pv), out_dtype),
                   jax.ShapeDtypeStruct((Bp, Pt), out_dtype)),
        grid=(Bp // tm,),
        in_specs=[
            pl.BlockSpec((tm, Hv), lambda i: (i, 0)),
            pl.BlockSpec((Hv, Pv), lambda i: (0, 0)),   # resident vision W
            pl.BlockSpec((1, Pv), lambda i: (0, 0)),    # resident vision b
            pl.BlockSpec((tm, Ht), lambda i: (i, 0)),
            pl.BlockSpec((Ht, Pt), lambda i: (0, 0)),   # resident text W
            pl.BlockSpec((1, Pt), lambda i: (0, 0)),    # resident text b
        ],
        out_specs=[
            pl.BlockSpec((tm, Pv), lambda i: (i, 0)),
            pl.BlockSpec((tm, Pt), lambda i: (i, 0)),
        ],
        compiler_params=pltpu.CompilerParams(
            dimension_semantics=("parallel",),
            vmem_limit_bytes=_VMEM_LIMIT),
        cost_estimate=cost,
    )(xi, wi, bi, xt, wt, bt)

    if Bp != B:
        out_i, out_t = out_i[:B], out_t[:B]
    return out_i, out_t


class BiomedCLIPPallas:
    """Trainable head of BiomedCLIP: vision/text projection + L2 normalize."""

    def __init__(self, vision_hidden=512, text_hidden=512, projection_dim=256,
                 key=jax.random.PRNGKey(0), compute_dtype=jnp.bfloat16,
                 out_dtype=jnp.bfloat16):
        kv, kt = jax.random.split(key)
        # nn.Linear weight is [out, in] with normal(0, 0.02); store transposed [in, out].
        self.vision_w_t = (0.02 * jax.random.normal(
            kv, (projection_dim, vision_hidden), jnp.float32)).T
        self.vision_b = jnp.zeros((projection_dim,), jnp.float32)
        self.text_w_t = (0.02 * jax.random.normal(
            kt, (projection_dim, text_hidden), jnp.float32)).T
        self.text_b = jnp.zeros((projection_dim,), jnp.float32)
        self.compute_dtype = compute_dtype
        self.out_dtype = out_dtype
        # Cached kernel-ready params: bf16 weights, (1, P) f32 biases
        # (no per-forward convert / reshape ops).
        self._vw = self.vision_w_t.astype(compute_dtype)
        self._tw = self.text_w_t.astype(compute_dtype)
        self._vb = self.vision_b.reshape(1, projection_dim)
        self._tb = self.text_b.reshape(1, projection_dim)

    def forward(self, image_features, text_features):
        """image_features: [B_i, vision_hidden] or None
           text_features : [B_t, text_hidden]  or None
           returns (image_embeds, text_embeds), each L2-normalized along dim 1."""
        if (image_features is not None and text_features is not None
                and image_features.shape[0] == text_features.shape[0]):
            return project_and_normalize_fused(
                image_features, self._vw, self._vb,
                text_features, self._tw, self._tb,
                compute_dtype=self.compute_dtype, out_dtype=self.out_dtype)
        image_embeds = None
        text_embeds = None
        if image_features is not None:
            image_embeds = project_and_normalize(
                image_features, self._vw, self._vb,
                compute_dtype=self.compute_dtype, out_dtype=self.out_dtype)
        if text_features is not None:
            text_embeds = project_and_normalize(
                text_features, self._tw, self._tb,
                compute_dtype=self.compute_dtype, out_dtype=self.out_dtype)
        return image_embeds, text_embeds


if __name__ == "__main__":
    key = jax.random.PRNGKey(0)
    k_img, k_txt, k_txt2, k_param = jax.random.split(key, 4)

    B = 2
    VISION_HIDDEN = 512   # BiomedCLIP image feature dim
    TEXT_HIDDEN = 512     # BiomedCLIP text feature dim
    PROJ = 256

    # Stand-ins for the frozen backbone outputs.
    image_features = jax.random.normal(k_img, (B, VISION_HIDDEN), jnp.float32)
    text_features = jax.random.normal(k_txt, (B, TEXT_HIDDEN), jnp.float32)

    model = BiomedCLIPPallas(VISION_HIDDEN, TEXT_HIDDEN, PROJ, key=k_param)

    # References.
    def ref_bf16(x, w_t, b):
        y = jnp.dot(x.astype(jnp.bfloat16), w_t.astype(jnp.bfloat16),
                    preferred_element_type=jnp.float32) + b
        n2 = jnp.sum(y * y, axis=1, keepdims=True)
        return y * jax.lax.rsqrt(jnp.maximum(n2, 1e-24))

    def ref_f32(x, w_t, b):
        y = x @ w_t + b
        n = jnp.sqrt(jnp.sum(y * y, axis=1, keepdims=True))
        return y / jnp.maximum(n, 1e-12)

    # 1) Fused dual-modality path (bf16 outputs).
    image_embeds, text_embeds = model.forward(image_features, text_features)
    image_embeds = jax.block_until_ready(image_embeds)
    text_embeds = jax.block_until_ready(text_embeds)
    assert image_embeds.shape == (B, PROJ) and text_embeds.shape == (B, PROJ)
    assert image_embeds.dtype == jnp.bfloat16 and text_embeds.dtype == jnp.bfloat16

    ref_img_bf = ref_bf16(image_features, model.vision_w_t, model.vision_b)
    ref_txt_bf = ref_bf16(text_features, model.text_w_t, model.text_b)
    ref_img_f32 = ref_f32(image_features, model.vision_w_t, model.vision_b)
    ref_txt_f32 = ref_f32(text_features, model.text_w_t, model.text_b)

    # bf16 output: tolerance covers the final bf16 store rounding (~2^-9).
    assert jnp.allclose(image_embeds.astype(jnp.float32), ref_img_bf, atol=8e-3, rtol=1e-2)
    assert jnp.allclose(text_embeds.astype(jnp.float32), ref_txt_bf, atol=8e-3, rtol=1e-2)
    # Coarse sanity check vs. the exact f32 PyTorch semantics (bf16 matmul error).
    assert jnp.allclose(image_embeds.astype(jnp.float32), ref_img_f32, atol=5e-2, rtol=5e-2)
    assert jnp.allclose(text_embeds.astype(jnp.float32), ref_txt_f32, atol=5e-2, rtol=5e-2)
    # Outputs must be unit-norm rows (bf16 rounding slack).
    assert jnp.allclose(jnp.linalg.norm(image_embeds.astype(jnp.float32), axis=1), 1.0, atol=1e-2)
    assert jnp.allclose(jnp.linalg.norm(text_embeds.astype(jnp.float32), axis=1), 1.0, atol=1e-2)

    # 2) Single-modality path (text only) with f32 output: tight check.
    text_only_f32 = project_and_normalize(
        text_features, model._tw, model._tb,
        compute_dtype=jnp.bfloat16, out_dtype=jnp.float32)
    text_only_f32 = jax.block_until_ready(text_only_f32)
    assert jnp.allclose(text_only_f32, ref_txt_bf, atol=1e-4, rtol=1e-4)
    assert jnp.allclose(jnp.linalg.norm(text_only_f32, axis=1), 1.0, atol=1e-3)

    # 3) Mismatched batch sizes: forward dispatches to per-modality calls (no cross-padding).
    text_features5 = jax.random.normal(k_txt2, (5, TEXT_HIDDEN), jnp.float32)
    img_e2, txt_e5 = model.forward(image_features, text_features5)
    img_e2 = jax.block_until_ready(img_e2)
    txt_e5 = jax.block_until_ready(txt_e5)
    assert img_e2.shape == (B, PROJ) and txt_e5.shape == (5, PROJ)
    ref_txt5_bf = ref_bf16(text_features5, model.text_w_t, model.text_b)
    assert jnp.allclose(img_e2.astype(jnp.float32), ref_img_bf, atol=8e-3, rtol=1e-2)
    assert jnp.allclose(txt_e5.astype(jnp.float32), ref_txt5_bf, atol=8e-3, rtol=1e-2)

    # 4) Multi-step grid + batch padding path (forced tm) also runs & matches.
    feat20 = jax.random.normal(k_txt2, (20, TEXT_HIDDEN), jnp.float32)
    out20 = project_and_normalize(feat20, model._tw, model._tb,
                                  compute_dtype=jnp.bfloat16,
                                  out_dtype=jnp.float32, tm=8)
    out20 = jax.block_until_ready(out20)
    ref20 = ref_bf16(feat20, model.text_w_t, model.text_b)
    assert out20.shape == (20, PROJ)
    assert jnp.allclose(out20, ref20, atol=1e-4, rtol=1e-4)

    print("KERNEL_OK")
</pallas_src>

<mosaic_0001>
module attributes {stable_mosaic.version = 11 : i64} {
  func.func @_dual_proj_norm_kernel(%arg0: i32, %arg1: memref<8x512xf32, #tpu.memory_space<vmem>>, %arg2: memref<512x256xbf16, #tpu.memory_space<vmem>>, %arg3: memref<1x256xf32, #tpu.memory_space<vmem>>, %arg4: memref<8x512xf32, #tpu.memory_space<vmem>>, %arg5: memref<512x256xbf16, #tpu.memory_space<vmem>>, %arg6: memref<1x256xf32, #tpu.memory_space<vmem>>, %arg7: memref<8x256xbf16, #tpu.memory_space<vmem>>, %arg8: memref<8x256xbf16, #tpu.memory_space<vmem>>) attributes {dimension_semantics = [#tpu.dimension_semantics<parallel>], iteration_bounds = array<i64: 1>, scalar_prefetch = 0 : i64, scratch_operands = 0 : i64, tpu.core_type = #tpu.core_type<tc>, window_params = [{transform_indices = @transform_0, window_bounds = array<i64: 8, 512>}, {pipeline_mode = #tpu.pipeline_mode<synchronous>, transform_indices = @transform_1, window_bounds = array<i64: 512, 256>}, {pipeline_mode = #tpu.pipeline_mode<synchronous>, transform_indices = @transform_2, window_bounds = array<i64: 1, 256>}, {transform_indices = @transform_3, window_bounds = array<i64: 8, 512>}, {pipeline_mode = #tpu.pipeline_mode<synchronous>, transform_indices = @transform_4, window_bounds = array<i64: 512, 256>}, {pipeline_mode = #tpu.pipeline_mode<synchronous>, transform_indices = @transform_5, window_bounds = array<i64: 1, 256>}, {transform_indices = @transform_6, window_bounds = array<i64: 8, 256>}, {transform_indices = @transform_7, window_bounds = array<i64: 8, 256>}]} {
    %c0 = arith.constant 0 : index
    %c0_0 = arith.constant 0 : index
    %0 = vector.load %arg1[%c0, %c0_0] : memref<8x512xf32, #tpu.memory_space<vmem>>, vector<8x512xf32>
    %1 = arith.truncf %0 : vector<8x512xf32> to vector<8x512xbf16>
    %c0_1 = arith.constant 0 : index
    %c0_2 = arith.constant 0 : index
    %2 = vector.load %arg2[%c0_1, %c0_2] : memref<512x256xbf16, #tpu.memory_space<vmem>>, vector<512x256xbf16>
    %cst = arith.constant dense<0.000000e+00> : vector<8x256xf32>
    %3 = tpu.matmul %1, %2, %cst {dimension_numbers = #tpu.dot_dimension_numbers<[1], [0], [0], [1], [0, 0, 1, 1], [], []>} : vector<8x512xbf16>, vector<512x256xbf16>, vector<8x256xf32> -> vector<8x256xf32>
    %c0_3 = arith.constant 0 : index
    %c0_4 = arith.constant 0 : index
    %4 = vector.load %arg3[%c0_3, %c0_4] : memref<1x256xf32, #tpu.memory_space<vmem>>, vector<1x256xf32>
    %5 = vector.broadcast %4 : vector<1x256xf32> to vector<8x256xf32>
    %6 = arith.addf %3, %5 : vector<8x256xf32>
    %7 = arith.mulf %6, %6 : vector<8x256xf32>
    %cst_5 = arith.constant dense<0.000000e+00> : vector<8xf32>
    %8 = vector.multi_reduction <add>, %7, %cst_5 [1] : vector<8x256xf32> to vector<8xf32>
    %9 = vector.shape_cast %8 : vector<8xf32> to vector<8x1xf32>
    %cst_6 = arith.constant 1.000000e-24 : f32
    %10 = vector.broadcast %cst_6 : f32 to vector<8x1xf32>
    %11 = arith.maximumf %9, %10 : vector<8x1xf32>
    %12 = math.rsqrt %11 : vector<8x1xf32>
    %13 = vector.broadcast %12 : vector<8x1xf32> to vector<8x256xf32>
    %14 = arith.mulf %6, %13 : vector<8x256xf32>
    %15 = arith.truncf %14 : vector<8x256xf32> to vector<8x256xbf16>
    %c0_7 = arith.constant 0 : index
    %c0_8 = arith.constant 0 : index
    %16 = vector.load %arg7[%c0_7, %c0_8] : memref<8x256xbf16, #tpu.memory_space<vmem>>, vector<8x256xbf16>
    tpu.vector_store %arg7[%c0_7, %c0_8], %15 {strides = array<i32>} : memref<8x256xbf16, #tpu.memory_space<vmem>>, vector<8x256xbf16>,
    %c0_9 = arith.constant 0 : index
    %c0_10 = arith.constant 0 : index
    %17 = vector.load %arg4[%c0_9, %c0_10] : memref<8x512xf32, #tpu.memory_space<vmem>>, vector<8x512xf32>
    %18 = arith.truncf %17 : vector<8x512xf32> to vector<8x512xbf16>
    %c0_11 = arith.constant 0 : index
    %c0_12 = arith.constant 0 : index
    %19 = vector.load %arg5[%c0_11, %c0_12] : memref<512x256xbf16, #tpu.memory_space<vmem>>, vector<512x256xbf16>
    %cst_13 = arith.constant dense<0.000000e+00> : vector<8x256xf32>
    %20 = tpu.matmul %18, %19, %cst_13 {dimension_numbers = #tpu.dot_dimension_numbers<[1], [0], [0], [1], [0, 0, 1, 1], [], []>} : vector<8x512xbf16>, vector<512x256xbf16>, vector<8x256xf32> -> vector<8x256xf32>
    %c0_14 = arith.constant 0 : index
    %c0_15 = arith.constant 0 : index
    %21 = vector.load %arg6[%c0_14, %c0_15] : memref<1x256xf32, #tpu.memory_space<vmem>>, vector<1x256xf32>
    %22 = vector.broadcast %21 : vector<1x256xf32> to vector<8x256xf32>
    %23 = arith.addf %20, %22 : vector<8x256xf32>
    %24 = arith.mulf %23, %23 : vector<8x256xf32>
    %cst_16 = arith.constant dense<0.000000e+00> : vector<8xf32>
    %25 = vector.multi_reduction <add>, %24, %cst_16 [1] : vector<8x256xf32> to vector<8xf32>
    %26 = vector.shape_cast %25 : vector<8xf32> to vector<8x1xf32>
    %cst_17 = arith.constant 1.000000e-24 : f32
    %27 = vector.broadcast %cst_17 : f32 to vector<8x1xf32>
    %28 = arith.maximumf %26, %27 : vector<8x1xf32>
    %29 = math.rsqrt %28 : vector<8x1xf32>
    %30 = vector.broadcast %29 : vector<8x1xf32> to vector<8x256xf32>
    %31 = arith.mulf %23, %30 : vector<8x256xf32>
    %32 = arith.truncf %31 : vector<8x256xf32> to vector<8x256xbf16>
    %c0_18 = arith.constant 0 : index
    %c0_19 = arith.constant 0 : index
    %33 = vector.load %arg8[%c0_18, %c0_19] : memref<8x256xbf16, #tpu.memory_space<vmem>>, vector<8x256xbf16>
    tpu.vector_store %arg8[%c0_18, %c0_19], %32 {strides = array<i32>} : memref<8x256xbf16, #tpu.memory_space<vmem>>, vector<8x256xbf16>,
    return
  }
  func.func @transform_0(%arg0: i32) -> (i32, i32) {
    %c0_i32 = arith.constant 0 : i32
    %c0_i32_0 = arith.constant 0 : i32
    return %arg0, %c0_i32 : i32, i32
  }
  func.func @transform_1(%arg0: i32) -> (i32, i32) {
    %c0_i32 = arith.constant 0 : i32
    %c0_i32_0 = arith.constant 0 : i32
    %c0_i32_1 = arith.constant 0 : i32
    return %c0_i32, %c0_i32_0 : i32, i32
  }
  func.func @transform_2(%arg0: i32) -> (i32, i32) {
    %c0_i32 = arith.constant 0 : i32
    %c0_i32_0 = arith.constant 0 : i32
    %c0_i32_1 = arith.constant 0 : i32
    return %c0_i32, %c0_i32_0 : i32, i32
  }
  func.func @transform_3(%arg0: i32) -> (i32, i32) {
    %c0_i32 = arith.constant 0 : i32
    %c0_i32_0 = arith.constant 0 : i32
    return %arg0, %c0_i32 : i32, i32
  }
  func.func @transform_4(%arg0: i32) -> (i32, i32) {
    %c0_i32 = arith.constant 0 : i32
    %c0_i32_0 = arith.constant 0 : i32
    %c0_i32_1 = arith.constant 0 : i32
    return %c0_i32, %c0_i32_0 : i32, i32
  }
  func.func @transform_5(%arg0: i32) -> (i32, i32) {
    %c0_i32 = arith.constant 0 : i32
    %c0_i32_0 = arith.constant 0 : i32
    %c0_i32_1 = arith.constant 0 : i32
    return %c0_i32, %c0_i32_0 : i32, i32
  }
  func.func @transform_6(%arg0: i32) -> (i32, i32) {
    %c0_i32 = arith.constant 0 : i32
    %c0_i32_0 = arith.constant 0 : i32
    return %arg0, %c0_i32 : i32, i32
  }
  func.func @transform_7(%arg0: i32) -> (i32, i32) {
    %c0_i32 = arith.constant 0 : i32
    %c0_i32_0 = arith.constant 0 : i32
    return %arg0, %c0_i32 : i32, i32
  }
}

</mosaic_0001>

<llo_original>
// kernel: tpu_custom_call.1
$region0: #{tpu_custom_call.1}
  #allocation0 [shape = 'u32[]', space=smem, size = 0x4, offset = 0x4, fixed_abs, tag = 'smem constant byte address 0x4 - core index']
  #allocation1 [shape = 'u32[144,128]{1,0:T(1,128)}', space=vmem, size = 0x12000, scoped, tag = 'internal scratch']
  %s0 = inlined_call_operand.hbm [shape: f32[8,512], index: 0, kind: input, shape index: {}]
  %s1 = inlined_call_operand.hbm [shape: bf16[512,256], index: 1, kind: input, shape index: {}]
  %s2 = inlined_call_operand.vmem [shape: f32[1,256], index: 2, kind: input, shape index: {}]
  %s3 = inlined_call_operand.hbm [shape: f32[8,512], index: 3, kind: input, shape index: {}]
  %s4 = inlined_call_operand.hbm [shape: bf16[512,256], index: 4, kind: input, shape index: {}]
  %s5 = inlined_call_operand.vmem [shape: f32[1,256], index: 5, kind: input, shape index: {}]
  %s6 = inlined_call_operand.hbm [shape: bf16[8,256], index: 6, kind: output, shape index: {0}]
  %s7 = inlined_call_operand.hbm [shape: bf16[8,256], index: 7, kind: output, shape index: {1}]
  %8 = xla_tuple %s6, %s7
  %s9 = sld [smem:[#allocation0]]
  $region58: #{tpu_custom_call.1} parent=0
    _
  %s11 = ssub.s32 1, %s9
  %s12 = scalar_select 0, %s11, %s9
  $region1: #{tpu_custom_call.1} parent=0
    #allocation2 [shape = 'u8[16384]{0}', space=vmem, size = 0x4000, scoped, tag = 'input window, operand 0, single buffered']
    #allocation3 [shape = 's32[1]{0}', space=sflag, size = 0x4, scoped, tag = 'scoped memory for tpu_custom_call.1']
    #allocation4 [shape = 's32[1]{0}', space=sflag, size = 0x4, scoped, tag = 'scoped memory for tpu_custom_call.1']
    #allocation5 [shape = 'u8[262144]{0}', space=vmem, size = 0x40000, scoped, tag = 'input window, operand 1, single buffered']
    #allocation6 [shape = 's32[1]{0}', space=sflag, size = 0x4, scoped, tag = 'scoped memory for tpu_custom_call.1']
    #allocation7 [shape = 'u8[16384]{0}', space=vmem, size = 0x4000, scoped, tag = 'input window, operand 3, single buffered']
    #allocation8 [shape = 'u8[262144]{0}', space=vmem, size = 0x40000, scoped, tag = 'input window, operand 4, single buffered']
    #allocation9 [shape = 's32[1]{0}', space=sflag, size = 0x4, scoped, tag = 'scoped memory for tpu_custom_call.1']
    #allocation10 [shape = 'u8[4096]{0}', space=vmem, size = 0x1000, scoped, tag = 'output window, operand 0, single buffered']
    #allocation11 [shape = 'u8[4096]{0}', space=vmem, size = 0x1000, scoped, tag = 'output window, operand 1, single buffered']
    #allocation12 [shape = 's32[1]{0}', space=sflag, size = 0x4, scoped, tag = 'scoped memory for tpu_custom_call.1']
    %13 = vsyncpa [#allocation3], 0
    %14 = vsyncpa [#allocation6], 0
    %15 = vsyncpa [#allocation9], 0
    %16 = vsyncpa [#allocation4], 0
    %17 = vsyncpa [#allocation12], 0
    // Predicated region
    $region2: #{tpu_custom_call.1} parent=1 // pred_check
      _
    $region3: #{tpu_custom_call.1} parent=1 // pred_check_branch
      %19 = sbr.rel (0) target = $region5
    $region4: #{tpu_custom_call.1} parent=1 // pred_region
      %s21 = ssub.s32 512, 512
      %22 = vsyncadd [#allocation3], %s21
      %s24 = sshll.u32 [#allocation2], 4
      %s25 = int_to_ptr.vmem [resolvable:$true] %s24
      %27 = dma.hbm_to_vmem [thread:$0]  %s0, 512, %s25, [#allocation3]
    $region5: #{tpu_custom_call.1} parent=1 // pred_fallthru
      _
    // Predicated region
    $region6: #{tpu_custom_call.1} parent=1 // pred_check
      _
    $region7: #{tpu_custom_call.1} parent=1 // pred_check_branch
      %29 = sbr.rel (0) target = $region9
    $region8: #{tpu_custom_call.1} parent=1 // pred_region
      %s31 = ssub.s32 8192, 8192
      %32 = vsyncadd [#allocation6], %s31
      %s33 = sshll.u32 [#allocation5], 4
      %s34 = int_to_ptr.vmem [resolvable:$true] %s33
      %39 = dma.hbm_to_vmem [thread:$0]  %s1, 8192, %s34, [#allocation6], 128, 128, 8
    $region9: #{tpu_custom_call.1} parent=1 // pred_fallthru
      _
    // Predicated region
    $region10: #{tpu_custom_call.1} parent=1 // pred_check
      _
    $region11: #{tpu_custom_call.1} parent=1 // pred_check_branch
      %41 = sbr.rel (0) target = $region13
    $region12: #{tpu_custom_call.1} parent=1 // pred_region
      _
    $region13: #{tpu_custom_call.1} parent=1 // pred_fallthru
      _
    // Predicated region
    $region14: #{tpu_custom_call.1} parent=1 // pred_check
      _
    $region15: #{tpu_custom_call.1} parent=1 // pred_check_branch
      %43 = sbr.rel (0) target = $region17
    $region16: #{tpu_custom_call.1} parent=1 // pred_region
      %s45 = ssub.s32 512, 512
      %46 = vsyncadd [#allocation6], %s45
      %s48 = sshll.u32 [#allocation7], 4
      %s49 = int_to_ptr.vmem [resolvable:$true] %s48
      %51 = dma.hbm_to_vmem [thread:$0]  %s3, 512, %s49, [#allocation6]
    $region17: #{tpu_custom_call.1} parent=1 // pred_fallthru
      _
    // Predicated region
    $region18: #{tpu_custom_call.1} parent=1 // pred_check
      _
    $region19: #{tpu_custom_call.1} parent=1 // pred_check_branch
      %53 = sbr.rel (0) target = $region21
    $region20: #{tpu_custom_call.1} parent=1 // pred_region
      %s55 = ssub.s32 8192, 8192
      %56 = vsyncadd [#allocation9], %s55
      %s57 = sshll.u32 [#allocation8], 4
      %s58 = int_to_ptr.vmem [resolvable:$true] %s57
      %63 = dma.hbm_to_vmem [thread:$0]  %s4, 8192, %s58, [#allocation9], 128, 128, 8
    $region21: #{tpu_custom_call.1} parent=1 // pred_fallthru
      _
    // Predicated region
    $region22: #{tpu_custom_call.1} parent=1 // pred_check
      _
    $region23: #{tpu_custom_call.1} parent=1 // pred_check_branch
      %65 = sbr.rel (0) target = $region25
    $region24: #{tpu_custom_call.1} parent=1 // pred_region
      _
    $region25: #{tpu_custom_call.1} parent=1 // pred_fallthru
      _
    // Predicated region
    $region26: #{tpu_custom_call.1} parent=1 // pred_check
      _
    $region27: #{tpu_custom_call.1} parent=1 // pred_check_branch
      %67 = sbr.rel (0) target = $region29
    $region28: #{tpu_custom_call.1} parent=1 // pred_region
      %68 = dma.done [#allocation3], 512
    $region29: #{tpu_custom_call.1} parent=1 // pred_fallthru
      _
    // Predicated region
    $region30: #{tpu_custom_call.1} parent=1 // pred_check
      _
    $region31: #{tpu_custom_call.1} parent=1 // pred_check_branch
      %70 = sbr.rel (0) target = $region33
    $region32: #{tpu_custom_call.1} parent=1 // pred_region
      %71 = dma.done [#allocation6], 8192
    $region33: #{tpu_custom_call.1} parent=1 // pred_fallthru
      _
    // Predicated region
    $region34: #{tpu_custom_call.1} parent=1 // pred_check
      _
    $region35: #{tpu_custom_call.1} parent=1 // pred_check_branch
      %73 = sbr.rel (0) target = $region37
    $region36: #{tpu_custom_call.1} parent=1 // pred_region
      %74 = dma.done [#allocation6], 512
    $region37: #{tpu_custom_call.1} parent=1 // pred_fallthru
      _
    // Predicated region
    $region38: #{tpu_custom_call.1} parent=1 // pred_check
      _
    $region39: #{tpu_custom_call.1} parent=1 // pred_check_branch
      %76 = sbr.rel (0) target = $region41
    $region40: #{tpu_custom_call.1} parent=1 // pred_region
      %77 = dma.done [#allocation9], 8192
    $region41: #{tpu_custom_call.1} parent=1 // pred_fallthru
      _
    %v78 = vld [vmem:[#allocation2] sm:$0xff]
    %v79 = vld [vmem:[#allocation2 + $0x8] sm:$0xff]
    %v80 = vld [vmem:[#allocation2 + $0x10] sm:$0xff]
    %v81 = vld [vmem:[#allocation2 + $0x18] sm:$0xff]
    %v82 = vpack.c.bf16 %v78, %v78
    %v83 = vpack.c.bf16 %v79, %v79
    %v84 = vpack.c.bf16 %v80, %v80
    %v85 = vpack.c.bf16 %v81, %v81
    %v86 = vld [vmem:[#allocation5] sm:$0xff]
    %v87 = vld [vmem:[#allocation5 + $0x8] sm:$0xff]
    %v88 = vld [vmem:[#allocation5 + $0x10] sm:$0xff]
    %v89 = vld [vmem:[#allocation5 + $0x18] sm:$0xff]
    %v90 = vld [vmem:[#allocation5 + $0x20] sm:$0xff]
    %v91 = vld [vmem:[#allocation5 + $0x28] sm:$0xff]
    %v92 = vld [vmem:[#allocation5 + $0x30] sm:$0xff]
    %v93 = vld [vmem:[#allocation5 + $0x38] sm:$0xff]
    %v94 = vld [vmem:[#allocation5 + $0x40] sm:$0xff]
    %v95 = vld [vmem:[#allocation5 + $0x48] sm:$0xff]
    %v96 = vld [vmem:[#allocation5 + $0x50] sm:$0xff]
    %v97 = vld [vmem:[#allocation5 + $0x58] sm:$0xff]
    %v98 = vld [vmem:[#allocation5 + $0x60] sm:$0xff]
    %v99 = vld [vmem:[#allocation5 + $0x68] sm:$0xff]
    %v100 = vld [vmem:[#allocation5 + $0x70] sm:$0xff]
    %v101 = vld [vmem:[#allocation5 + $0x78] sm:$0xff]
    %v102 = vld [vmem:[#allocation5 + $0x80] sm:$0xff]
    %v103 = vld [vmem:[#allocation5 + $0x88] sm:$0xff]
    %v104 = vld [vmem:[#allocation5 + $0x90] sm:$0xff]
    %v105 = vld [vmem:[#allocation5 + $0x98] sm:$0xff]
    %v106 = vld [vmem:[#allocation5 + $0xa0] sm:$0xff]
    %v107 = vld [vmem:[#allocation5 + $0xa8] sm:$0xff]
    %v108 = vld [vmem:[#allocation5 + $0xb0] sm:$0xff]
    %v109 = vld [vmem:[#allocation5 + $0xb8] sm:$0xff]
    %v110 = vld [vmem:[#allocation5 + $0xc0] sm:$0xff]
    %v111 = vld [vmem:[#allocation5 + $0xc8] sm:$0xff]
    %v112 = vld [vmem:[#allocation5 + $0xd0] sm:$0xff]
    %v113 = vld [vmem:[#allocation5 + $0xd8] sm:$0xff]
    %v114 = vld [vmem:[#allocation5 + $0xe0] sm:$0xff]
    %v115 = vld [vmem:[#allocation5 + $0xe8] sm:$0xff]
    %v116 = vld [vmem:[#allocation5 + $0xf0] sm:$0xff]
    %v117 = vld [vmem:[#allocation5 + $0xf8] sm:$0xff]
    %v118 = vld [vmem:[#allocation5 + $0x100] sm:$0xff]
    %v119 = vld [vmem:[#allocation5 + $0x108] sm:$0xff]
    %v120 = vld [vmem:[#allocation5 + $0x110] sm:$0xff]
    %v121 = vld [vmem:[#allocation5 + $0x118] sm:$0xff]
    %v122 = vld [vmem:[#allocation5 + $0x120] sm:$0xff]
    %v123 = vld [vmem:[#allocation5 + $0x128] sm:$0xff]
    %v124 = vld [vmem:[#allocation5 + $0x130] sm:$0xff]
    %v125 = vld [vmem:[#allocation5 + $0x138] sm:$0xff]
    %v126 = vld [vmem:[#allocation5 + $0x140] sm:$0xff]
    %v127 = vld [vmem:[#allocation5 + $0x148] sm:$0xff]
    %v128 = vld [vmem:[#allocation5 + $0x150] sm:$0xff]
    %v129 = vld [vmem:[#allocation5 + $0x158] sm:$0xff]
    %v130 = vld [vmem:[#allocation5 + $0x160] sm:$0xff]
    %v131 = vld [vmem:[#allocation5 + $0x168] sm:$0xff]
    %v132 = vld [vmem:[#allocation5 + $0x170] sm:$0xff]
    %v133 = vld [vmem:[#allocation5 + $0x178] sm:$0xff]
    %v134 = vld [vmem:[#allocation5 + $0x180] sm:$0xff]
    %v135 = vld [vmem:[#allocation5 + $0x188] sm:$0xff]
    %v136 = vld [vmem:[#allocation5 + $0x190] sm:$0xff]
    %v137 = vld [vmem:[#allocation5 + $0x198] sm:$0xff]
    %v138 = vld [vmem:[#allocation5 + $0x1a0] sm:$0xff]
    %v139 = vld [vmem:[#allocation5 + $0x1a8] sm:$0xff]
    %v140 = vld [vmem:[#allocation5 + $0x1b0] sm:$0xff]
    %v141 = vld [vmem:[#allocation5 + $0x1b8] sm:$0xff]
    %v142 = vld [vmem:[#allocation5 + $0x1c0] sm:$0xff]
    %v143 = vld [vmem:[#allocation5 + $0x1c8] sm:$0xff]
    %v144 = vld [vmem:[#allocation5 + $0x1d0] sm:$0xff]
    %v145 = vld [vmem:[#allocation5 + $0x1d8] sm:$0xff]
    %v146 = vld [vmem:[#allocation5 + $0x1e0] sm:$0xff]
    %v147 = vld [vmem:[#allocation5 + $0x1e8] sm:$0xff]
    %v148 = vld [vmem:[#allocation5 + $0x1f0] sm:$0xff]
    %v149 = vld [vmem:[#allocation5 + $0x1f8] sm:$0xff]
    %v150 = vld [vmem:[%s2] sm:$0x3]
    %v152 = vlaneseq
    %v153 = vshrl.u32 %v152, 7
    %v154 = vsub.s32 0, %v153
    %v155 = vrot.slane %v150, %v154
    %v156 = vlaneseq
    %v157 = vshrl.u32 %v156, 7
    %v158 = vsub.s32 1, %v157
    %v159 = vrot.slane %v150, %v158
    %v226 = vunpack.c.l.b16 %v86
    %v227 = vunpack.c.h.b16 %v86
    %v228 = vunpack.c.l.b16 %v87
    %v229 = vunpack.c.h.b16 %v87
    %v230 = vunpack.c.l.b16 %v88
    %v231 = vunpack.c.h.b16 %v88
    %v232 = vunpack.c.l.b16 %v89
    %v233 = vunpack.c.h.b16 %v89
    %v234 = vunpack.c.l.b16 %v90
    %v235 = vunpack.c.h.b16 %v90
    %v236 = vunpack.c.l.b16 %v91
    %v237 = vunpack.c.h.b16 %v91
    %v238 = vunpack.c.l.b16 %v92
    %v239 = vunpack.c.h.b16 %v92
    %v240 = vunpack.c.l.b16 %v93
    %v241 = vunpack.c.h.b16 %v93
    %v242 = vunpack.c.l.b16 %v94
    %v243 = vunpack.c.h.b16 %v94
    %v244 = vunpack.c.l.b16 %v95
    %v245 = vunpack.c.h.b16 %v95
    %v246 = vunpack.c.l.b16 %v96
    %v247 = vunpack.c.h.b16 %v96
    %v248 = vunpack.c.l.b16 %v97
    %v249 = vunpack.c.h.b16 %v97
    %v250 = vunpack.c.l.b16 %v98
    %v251 = vunpack.c.h.b16 %v98
    %v252 = vunpack.c.l.b16 %v99
    %v253 = vunpack.c.h.b16 %v99
    %v254 = vunpack.c.l.b16 %v100
    %v255 = vunpack.c.h.b16 %v100
    %v256 = vunpack.c.l.b16 %v101
    %v257 = vunpack.c.h.b16 %v101
    %v258 = vunpack.c.l.b16 %v102
    %v259 = vunpack.c.h.b16 %v102
    %v260 = vunpack.c.l.b16 %v103
    %v261 = vunpack.c.h.b16 %v103
    %v262 = vunpack.c.l.b16 %v104
    %v263 = vunpack.c.h.b16 %v104
    %v264 = vunpack.c.l.b16 %v105
    %v265 = vunpack.c.h.b16 %v105
    %v266 = vunpack.c.l.b16 %v106
    %v267 = vunpack.c.h.b16 %v106
    %v268 = vunpack.c.l.b16 %v107
    %v269 = vunpack.c.h.b16 %v107
    %v270 = vunpack.c.l.b16 %v108
    %v271 = vunpack.c.h.b16 %v108
    %v272 = vunpack.c.l.b16 %v109
    %v273 = vunpack.c.h.b16 %v109
    %v274 = vunpack.c.l.b16 %v110
    %v275 = vunpack.c.h.b16 %v110
    %v276 = vunpack.c.l.b16 %v111
    %v277 = vunpack.c.h.b16 %v111
    %v278 = vunpack.c.l.b16 %v112
    %v279 = vunpack.c.h.b16 %v112
    %v280 = vunpack.c.l.b16 %v113
    %v281 = vunpack.c.h.b16 %v113
    %v282 = vunpack.c.l.b16 %v114
    %v283 = vunpack.c.h.b16 %v114
    %v284 = vunpack.c.l.b16 %v115
    %v285 = vunpack.c.h.b16 %v115
    %v286 = vunpack.c.l.b16 %v116
    %v287 = vunpack.c.h.b16 %v116
    %v288 = vunpack.c.l.b16 %v117
    %v289 = vunpack.c.h.b16 %v117
    %v290 = vunpack.c.l.b16 %v118
    %v291 = vunpack.c.h.b16 %v118
    %v292 = vunpack.c.l.b16 %v119
    %v293 = vunpack.c.h.b16 %v119
    %v294 = vunpack.c.l.b16 %v120
    %v295 = vunpack.c.h.b16 %v120
    %v296 = vunpack.c.l.b16 %v121
    %v297 = vunpack.c.h.b16 %v121
    %v298 = vunpack.c.l.b16 %v122
    %v299 = vunpack.c.h.b16 %v122
    %v300 = vunpack.c.l.b16 %v123
    %v301 = vunpack.c.h.b16 %v123
    %v302 = vunpack.c.l.b16 %v124
    %v303 = vunpack.c.h.b16 %v124
    %v304 = vunpack.c.l.b16 %v125
    %v305 = vunpack.c.h.b16 %v125
    %v306 = vunpack.c.l.b16 %v126
    %v307 = vunpack.c.h.b16 %v126
    %v308 = vunpack.c.l.b16 %v127
    %v309 = vunpack.c.h.b16 %v127
    %v310 = vunpack.c.l.b16 %v128
    %v311 = vunpack.c.h.b16 %v128
    %v312 = vunpack.c.l.b16 %v129
    %v313 = vunpack.c.h.b16 %v129
    %v314 = vunpack.c.l.b16 %v130
    %v315 = vunpack.c.h.b16 %v130
    %v316 = vunpack.c.l.b16 %v131
    %v317 = vunpack.c.h.b16 %v131
    %v318 = vunpack.c.l.b16 %v132
    %v319 = vunpack.c.h.b16 %v132
    %v320 = vunpack.c.l.b16 %v133
    %v321 = vunpack.c.h.b16 %v133
    %v322 = vunpack.c.l.b16 %v134
    %v323 = vunpack.c.h.b16 %v134
    %v324 = vunpack.c.l.b16 %v135
    %v325 = vunpack.c.h.b16 %v135
    %v326 = vunpack.c.l.b16 %v136
    %v327 = vunpack.c.h.b16 %v136
    %v328 = vunpack.c.l.b16 %v137
    %v329 = vunpack.c.h.b16 %v137
    %v330 = vunpack.c.l.b16 %v138
    %v331 = vunpack.c.h.b16 %v138
    %v332 = vunpack.c.l.b16 %v139
    %v333 = vunpack.c.h.b16 %v139
    %v334 = vunpack.c.l.b16 %v140
    %v335 = vunpack.c.h.b16 %v140
    %v336 = vunpack.c.l.b16 %v141
    %v337 = vunpack.c.h.b16 %v141
    %v338 = vunpack.c.l.b16 %v142
    %v339 = vunpack.c.h.b16 %v142
    %v340 = vunpack.c.l.b16 %v143
    %v341 = vunpack.c.h.b16 %v143
    %v342 = vunpack.c.l.b16 %v144
    %v343 = vunpack.c.h.b16 %v144
    %v344 = vunpack.c.l.b16 %v145
    %v345 = vunpack.c.h.b16 %v145
    %v346 = vunpack.c.l.b16 %v146
    %v347 = vunpack.c.h.b16 %v146
    %v348 = vunpack.c.l.b16 %v147
    %v349 = vunpack.c.h.b16 %v147
    %v350 = vunpack.c.l.b16 %v148
    %v351 = vunpack.c.h.b16 %v148
    %v352 = vunpack.c.l.b16 %v149
    %v353 = vunpack.c.h.b16 %v149
    %v354 = vpack.c.b16 %v228, %v226
    %v355 = vpack.c.b16 %v229, %v227
    %v356 = vpack.c.b16 %v232, %v230
    %v357 = vpack.c.b16 %v233, %v231
    %v358 = vpack.c.b16 %v236, %v234
    %v359 = vpack.c.b16 %v237, %v235
    %v360 = vpack.c.b16 %v240, %v238
    %v361 = vpack.c.b16 %v241, %v239
    %v362 = vpack.c.b16 %v244, %v242
    %v363 = vpack.c.b16 %v245, %v243
    %v364 = vpack.c.b16 %v248, %v246
    %v365 = vpack.c.b16 %v249, %v247
    %v366 = vpack.c.b16 %v252, %v250
    %v367 = vpack.c.b16 %v253, %v251
    %v368 = vpack.c.b16 %v256, %v254
    %v369 = vpack.c.b16 %v257, %v255
    %v370 = vpack.c.b16 %v260, %v258
    %v371 = vpack.c.b16 %v261, %v259
    %v372 = vpack.c.b16 %v264, %v262
    %v373 = vpack.c.b16 %v265, %v263
    %v374 = vpack.c.b16 %v268, %v266
    %v375 = vpack.c.b16 %v269, %v267
    %v376 = vpack.c.b16 %v272, %v270
    %v377 = vpack.c.b16 %v273, %v271
    %v378 = vpack.c.b16 %v276, %v274
    %v379 = vpack.c.b16 %v277, %v275
    %v380 = vpack.c.b16 %v280, %v278
    %v381 = vpack.c.b16 %v281, %v279
    %v382 = vpack.c.b16 %v284, %v282
    %v383 = vpack.c.b16 %v285, %v283
    %v384 = vpack.c.b16 %v288, %v286
    %v385 = vpack.c.b16 %v289, %v287
    %v386 = vpack.c.b16 %v292, %v290
    %v387 = vpack.c.b16 %v293, %v291
    %v388 = vpack.c.b16 %v296, %v294
    %v389 = vpack.c.b16 %v297, %v295
    %v390 = vpack.c.b16 %v300, %v298
    %v391 = vpack.c.b16 %v301, %v299
    %v392 = vpack.c.b16 %v304, %v302
    %v393 = vpack.c.b16 %v305, %v303
    %v394 = vpack.c.b16 %v308, %v306
    %v395 = vpack.c.b16 %v309, %v307
    %v396 = vpack.c.b16 %v312, %v310
    %v397 = vpack.c.b16 %v313, %v311
    %v398 = vpack.c.b16 %v316, %v314
    %v399 = vpack.c.b16 %v317, %v315
    %v400 = vpack.c.b16 %v320, %v318
    %v401 = vpack.c.b16 %v321, %v319
    %v402 = vpack.c.b16 %v324, %v322
    %v403 = vpack.c.b16 %v325, %v323
    %v404 = vpack.c.b16 %v328, %v326
    %v405 = vpack.c.b16 %v329, %v327
    %v406 = vpack.c.b16 %v332, %v330
    %v407 = vpack.c.b16 %v333, %v331
    %v408 = vpack.c.b16 %v336, %v334
    %v409 = vpack.c.b16 %v337, %v335
    %v410 = vpack.c.b16 %v340, %v338
    %v411 = vpack.c.b16 %v341, %v339
    %v412 = vpack.c.b16 %v344, %v342
    %v413 = vpack.c.b16 %v345, %v343
    %v414 = vpack.c.b16 %v348, %v346
    %v415 = vpack.c.b16 %v349, %v347
    %v416 = vpack.c.b16 %v352, %v350
    %v417 = vpack.c.b16 %v353, %v351
    %482 = vmatprep.subr.bf16.mxu0 %v369
    %483 = vmatpush1.bf16.msra.mxu0 %v368
    %484 = vmatprep.subr.bf16.mxu0 %v367
    %485 = vmatpush1.bf16.msra.mxu0 %v366
    %486 = vmatprep.subr.bf16.mxu0 %v365
    %487 = vmatpush1.bf16.msra.mxu0 %v364
    %488 = vmatprep.subr.bf16.mxu0 %v363
    %489 = vmatpush1.bf16.msra.mxu0 %v362
    %490 = vmatprep.subr.bf16.mxu0 %v361
    %491 = vmatpush1.bf16.msra.mxu0 %v360
    %492 = vmatprep.subr.bf16.mxu0 %v359
    %493 = vmatpush1.bf16.msra.mxu0 %v358
    %494 = vmatprep.subr.bf16.mxu0 %v357
    %495 = vmatpush1.bf16.msra.mxu0 %v356
    %496 = vmatprep.subr.bf16.mxu0 %v355
    %497 = vmatpush1.bf16.msra.mxu0 %v354
    %498 = vmatprep.subr.bf16.mxu0 %v385
    %499 = vmatpush2.bf16.msra.mxu0 %v384
    %500 = vmatprep.subr.bf16.mxu0 %v383
    %501 = vmatpush2.bf16.msra.mxu0 %v382
    %502 = vmatprep.subr.bf16.mxu0 %v381
    %503 = vmatpush2.bf16.msra.mxu0 %v380
    %504 = vmatprep.subr.bf16.mxu0 %v379
    %505 = vmatpush2.bf16.msra.mxu0 %v378
    %506 = vmatprep.subr.bf16.mxu0 %v377
    %507 = vmatpush2.bf16.msra.mxu0 %v376
    %508 = vmatprep.subr.bf16.mxu0 %v375
    %509 = vmatpush2.bf16.msra.mxu0 %v374
    %510 = vmatprep.subr.bf16.mxu0 %v373
    %511 = vmatpush2.bf16.msra.mxu0 %v372
    %512 = vmatprep.subr.bf16.mxu0 %v371
    %513 = vmatpush2.bf16.msra.mxu0 %v370
    %514 = vmatprep.mubr.bf16.mxu0 %v83
    %515 = vmatmul.mubr.bf16.gmra.mxu0 %v82
    %v516 = vpop.f32.mrf.mxu0
    %v517 = vadd.f32 %v155, %v516
    %v518 = vpop.f32.mrf.mxu0
    %v519 = vadd.f32 %v159, %v518
    %v520 = vpop.f32.mrf.mxu0
    %v521 = vpop.f32.mrf.mxu0
    %522 = vdwg.mxu0
    %523 = vmatprep.subr.bf16.mxu0 %v401
    %524 = vmatpush1.bf16.msra.mxu0 %v400
    %525 = vmatprep.subr.bf16.mxu0 %v399
    %526 = vmatpush1.bf16.msra.mxu0 %v398
    %527 = vmatprep.subr.bf16.mxu0 %v397
    %528 = vmatpush1.bf16.msra.mxu0 %v396
    %529 = vmatprep.subr.bf16.mxu0 %v395
    %530 = vmatpush1.bf16.msra.mxu0 %v394
    %531 = vmatprep.subr.bf16.mxu0 %v393
    %532 = vmatpush1.bf16.msra.mxu0 %v392
    %533 = vmatprep.subr.bf16.mxu0 %v391
    %534 = vmatpush1.bf16.msra.mxu0 %v390
    %535 = vmatprep.subr.bf16.mxu0 %v389
    %536 = vmatpush1.bf16.msra.mxu0 %v388
    %537 = vmatprep.subr.bf16.mxu0 %v387
    %538 = vmatpush1.bf16.msra.mxu0 %v386
    %539 = vmatprep.subr.bf16.mxu0 %v417
    %540 = vmatpush2.bf16.msra.mxu0 %v416
    %541 = vmatprep.subr.bf16.mxu0 %v415
    %542 = vmatpush2.bf16.msra.mxu0 %v414
    %543 = vmatprep.subr.bf16.mxu0 %v413
    %544 = vmatpush2.bf16.msra.mxu0 %v412
    %545 = vmatprep.subr.bf16.mxu0 %v411
    %546 = vmatpush2.bf16.msra.mxu0 %v410
    %547 = vmatprep.subr.bf16.mxu0 %v409
    %548 = vmatpush2.bf16.msra.mxu0 %v408
    %549 = vmatprep.subr.bf16.mxu0 %v407
    %550 = vmatpush2.bf16.msra.mxu0 %v406
    %551 = vmatprep.subr.bf16.mxu0 %v405
    %552 = vmatpush2.bf16.msra.mxu0 %v404
    %553 = vmatprep.subr.bf16.mxu0 %v403
    %554 = vmatpush2.bf16.msra.mxu0 %v402
    %555 = vmatprep.mubr.bf16.mxu0 %v85
    %556 = vmatmul.mubr.bf16.gmra.mxu0 %v84
    %v557 = vpop.f32.mrf.mxu0
    %v558 = vadd.f32 %v517, %v557
    %v559 = vpop.f32.mrf.mxu0
    %v560 = vadd.f32 %v519, %v559
    %v561 = vpop.f32.mrf.mxu0
    %v562 = vpop.f32.mrf.mxu0
    %563 = vdwg.mxu0
    %v564 = vmul.f32 %v558, %v558
    %v565 = vmul.f32 %v560, %v560
    %v566 = vadd.f32 %v564, %v565
    %567 = vadd.xlane.f32.xlu0 %v566
    %v568 = vpop.xlane.xlu0 %567
    %v569 = vmax.f32 %v568, 1e-24
    %v570 = vrsqrt.pop %v569
    %v571 = vmul.f32 %v558, %v570
    %v572 = vmul.f32 %v560, %v570
    %v573 = vpack.c.bf16 %v571, %v571
    %v574 = vpack.c.bf16 %v572, %v572
    %v577 = vunpack.c.l.b16 %v573
    %v578 = vunpack.c.l.b16 %v574
    %v579 = vpack.c.b16 %v578, %v577
    %581 = vst [vmem:[#allocation10] sm:$0xff] %v579
    %v582 = vld [vmem:[#allocation7] sm:$0xff]
    %v583 = vld [vmem:[#allocation7 + $0x8] sm:$0xff]
    %v584 = vld [vmem:[#allocation7 + $0x10] sm:$0xff]
    %v585 = vld [vmem:[#allocation7 + $0x18] sm:$0xff]
    %v586 = vpack.c.bf16 %v582, %v582
    %v587 = vpack.c.bf16 %v583, %v583
    %v588 = vpack.c.bf16 %v584, %v584
    %v589 = vpack.c.bf16 %v585, %v585
    %v590 = vld [vmem:[#allocation8] sm:$0xff]
    %v591 = vld [vmem:[#allocation8 + $0x8] sm:$0xff]
    %v592 = vld [vmem:[#allocation8 + $0x10] sm:$0xff]
    %v593 = vld [vmem:[#allocation8 + $0x18] sm:$0xff]
    %v594 = vld [vmem:[#allocation8 + $0x20] sm:$0xff]
    %v595 = vld [vmem:[#allocation8 + $0x28] sm:$0xff]
    %v596 = vld [vmem:[#allocation8 + $0x30] sm:$0xff]
    %v597 = vld [vmem:[#allocation8 + $0x38] sm:$0xff]
    %v598 = vld [vmem:[#allocation8 + $0x40] sm:$0xff]
    %v599 = vld [vmem:[#allocation8 + $0x48] sm:$0xff]
    %v600 = vld [vmem:[#allocation8 + $0x50] sm:$0xff]
    %v601 = vld [vmem:[#allocation8 + $0x58] sm:$0xff]
    %v602 = vld [vmem:[#allocation8 + $0x60] sm:$0xff]
    %v603 = vld [vmem:[#allocation8 + $0x68] sm:$0xff]
    %v604 = vld [vmem:[#allocation8 + $0x70] sm:$0xff]
    %v605 = vld [vmem:[#allocation8 + $0x78] sm:$0xff]
    %v606 = vld [vmem:[#allocation8 + $0x80] sm:$0xff]
    %v607 = vld [vmem:[#allocation8 + $0x88] sm:$0xff]
    %v608 = vld [vmem:[#allocation8 + $0x90] sm:$0xff]
    %v609 = vld [vmem:[#allocation8 + $0x98] sm:$0xff]
    %v610 = vld [vmem:[#allocation8 + $0xa0] sm:$0xff]
    %v611 = vld [vmem:[#allocation8 + $0xa8] sm:$0xff]
    %v612 = vld [vmem:[#allocation8 + $0xb0] sm:$0xff]
    %v613 = vld [vmem:[#allocation8 + $0xb8] sm:$0xff]
    %v614 = vld [vmem:[#allocation8 + $0xc0] sm:$0xff]
    %v615 = vld [vmem:[#allocation8 + $0xc8] sm:$0xff]
    %v616 = vld [vmem:[#allocation8 + $0xd0] sm:$0xff]
    %v617 = vld [vmem:[#allocation8 + $0xd8] sm:$0xff]
    %v618 = vld [vmem:[#allocation8 + $0xe0] sm:$0xff]
    %v619 = vld [vmem:[#allocation8 + $0xe8] sm:$0xff]
    %v620 = vld [vmem:[#allocation8 + $0xf0] sm:$0xff]
    %v621 = vld [vmem:[#allocation8 + $0xf8] sm:$0xff]
    %v622 = vld [vmem:[#allocation8 + $0x100] sm:$0xff]
    %v623 = vld [vmem:[#allocation8 + $0x108] sm:$0xff]
    %v624 = vld [vmem:[#allocation8 + $0x110] sm:$0xff]
    %v625 = vld [vmem:[#allocation8 + $0x118] sm:$0xff]
    %v626 = vld [vmem:[#allocation8 + $0x120] sm:$0xff]
    %v627 = vld [vmem:[#allocation8 + $0x128] sm:$0xff]
    %v628 = vld [vmem:[#allocation8 + $0x130] sm:$0xff]
    %v629 = vld [vmem:[#allocation8 + $0x138] sm:$0xff]
    %v630 = vld [vmem:[#allocation8 + $0x140] sm:$0xff]
    %v631 = vld [vmem:[#allocation8 + $0x148] sm:$0xff]
    %v632 = vld [vmem:[#allocation8 + $0x150] sm:$0xff]
    %v633 = vld [vmem:[#allocation8 + $0x158] sm:$0xff]
    %v634 = vld [vmem:[#allocation8 + $0x160] sm:$0xff]
    %v635 = vld [vmem:[#allocation8 + $0x168] sm:$0xff]
    %v636 = vld [vmem:[#allocation8 + $0x170] sm:$0xff]
    %v637 = vld [vmem:[#allocation8 + $0x178] sm:$0xff]
    %v638 = vld [vmem:[#allocation8 + $0x180] sm:$0xff]
    %v639 = vld [vmem:[#allocation8 + $0x188] sm:$0xff]
    %v640 = vld [vmem:[#allocation8 + $0x190] sm:$0xff]
    %v641 = vld [vmem:[#allocation8 + $0x198] sm:$0xff]
    %v642 = vld [vmem:[#allocation8 + $0x1a0] sm:$0xff]
    %v643 = vld [vmem:[#allocation8 + $0x1a8] sm:$0xff]
    %v644 = vld [vmem:[#allocation8 + $0x1b0] sm:$0xff]
    %v645 = vld [vmem:[#allocation8 + $0x1b8] sm:$0xff]
    %v646 = vld [vmem:[#allocation8 + $0x1c0] sm:$0xff]
    %v647 = vld [vmem:[#allocation8 + $0x1c8] sm:$0xff]
    %v648 = vld [vmem:[#allocation8 + $0x1d0] sm:$0xff]
    %v649 = vld [vmem:[#allocation8 + $0x1d8] sm:$0xff]
    %v650 = vld [vmem:[#allocation8 + $0x1e0] sm:$0xff]
    %v651 = vld [vmem:[#allocation8 + $0x1e8] sm:$0xff]
    %v652 = vld [vmem:[#allocation8 + $0x1f0] sm:$0xff]
    %v653 = vld [vmem:[#allocation8 + $0x1f8] sm:$0xff]
    %v654 = vld [vmem:[%s5] sm:$0x3]
    %v656 = vlaneseq
    %v657 = vshrl.u32 %v656, 7
    %v658 = vsub.s32 0, %v657
    %v659 = vrot.slane %v654, %v658
    %v660 = vlaneseq
    %v661 = vshrl.u32 %v660, 7
    %v662 = vsub.s32 1, %v661
    %v663 = vrot.slane %v654, %v662
    %v730 = vunpack.c.l.b16 %v590
    %v731 = vunpack.c.h.b16 %v590
    %v732 = vunpack.c.l.b16 %v591
    %v733 = vunpack.c.h.b16 %v591
    %v734 = vunpack.c.l.b16 %v592
    %v735 = vunpack.c.h.b16 %v592
    %v736 = vunpack.c.l.b16 %v593
    %v737 = vunpack.c.h.b16 %v593
    %v738 = vunpack.c.l.b16 %v594
    %v739 = vunpack.c.h.b16 %v594
    %v740 = vunpack.c.l.b16 %v595
    %v741 = vunpack.c.h.b16 %v595
    %v742 = vunpack.c.l.b16 %v596
    %v743 = vunpack.c.h.b16 %v596
    %v744 = vunpack.c.l.b16 %v597
    %v745 = vunpack.c.h.b16 %v597
    %v746 = vunpack.c.l.b16 %v598
    %v747 = vunpack.c.h.b16 %v598
    %v748 = vunpack.c.l.b16 %v599
    %v749 = vunpack.c.h.b16 %v599
    %v750 = vunpack.c.l.b16 %v600
    %v751 = vunpack.c.h.b16 %v600
    %v752 = vunpack.c.l.b16 %v601
    %v753 = vunpack.c.h.b16 %v601
    %v754 = vunpack.c.l.b16 %v602
    %v755 = vunpack.c.h.b16 %v602
    %v756 = vunpack.c.l.b16 %v603
    %v757 = vunpack.c.h.b16 %v603
    %v758 = vunpack.c.l.b16 %v604
    %v759 = vunpack.c.h.b16 %v604
    %v760 = vunpack.c.l.b16 %v605
    %v761 = vunpack.c.h.b16 %v605
    %v762 = vunpack.c.l.b16 %v606
    %v763 = vunpack.c.h.b16 %v606
    %v764 = vunpack.c.l.b16 %v607
    %v765 = vunpack.c.h.b16 %v607
    %v766 = vunpack.c.l.b16 %v608
    %v767 = vunpack.c.h.b16 %v608
    %v768 = vunpack.c.l.b16 %v609
    %v769 = vunpack.c.h.b16 %v609
    %v770 = vunpack.c.l.b16 %v610
    %v771 = vunpack.c.h.b16 %v610
    %v772 = vunpack.c.l.b16 %v611
    %v773 = vunpack.c.h.b16 %v611
    %v774 = vunpack.c.l.b16 %v612
    %v775 = vunpack.c.h.b16 %v612
    %v776 = vunpack.c.l.b16 %v613
    %v777 = vunpack.c.h.b16 %v613
    %v778 = vunpack.c.l.b16 %v614
    %v779 = vunpack.c.h.b16 %v614
    %v780 = vunpack.c.l.b16 %v615
    %v781 = vunpack.c.h.b16 %v615
    %v782 = vunpack.c.l.b16 %v616
    %v783 = vunpack.c.h.b16 %v616
    %v784 = vunpack.c.l.b16 %v617
    %v785 = vunpack.c.h.b16 %v617
    %v786 = vunpack.c.l.b16 %v618
    %v787 = vunpack.c.h.b16 %v618
    %v788 = vunpack.c.l.b16 %v619
    %v789 = vunpack.c.h.b16 %v619
    %v790 = vunpack.c.l.b16 %v620
    %v791 = vunpack.c.h.b16 %v620
    %v792 = vunpack.c.l.b16 %v621
    %v793 = vunpack.c.h.b16 %v621
    %v794 = vunpack.c.l.b16 %v622
    %v795 = vunpack.c.h.b16 %v622
    %v796 = vunpack.c.l.b16 %v623
    %v797 = vunpack.c.h.b16 %v623
    %v798 = vunpack.c.l.b16 %v624
    %v799 = vunpack.c.h.b16 %v624
    %v800 = vunpack.c.l.b16 %v625
    %v801 = vunpack.c.h.b16 %v625
    %v802 = vunpack.c.l.b16 %v626
    %v803 = vunpack.c.h.b16 %v626
    %v804 = vunpack.c.l.b16 %v627
    %v805 = vunpack.c.h.b16 %v627
    %v806 = vunpack.c.l.b16 %v628
    %v807 = vunpack.c.h.b16 %v628
    %v808 = vunpack.c.l.b16 %v629
    %v809 = vunpack.c.h.b16 %v629
    %v810 = vunpack.c.l.b16 %v630
    %v811 = vunpack.c.h.b16 %v630
    %v812 = vunpack.c.l.b16 %v631
    %v813 = vunpack.c.h.b16 %v631
    %v814 = vunpack.c.l.b16 %v632
    %v815 = vunpack.c.h.b16 %v632
    %v816 = vunpack.c.l.b16 %v633
    %v817 = vunpack.c.h.b16 %v633
    %v818 = vunpack.c.l.b16 %v634
    %v819 = vunpack.c.h.b16 %v634
    %v820 = vunpack.c.l.b16 %v635
    %v821 = vunpack.c.h.b16 %v635
    %v822 = vunpack.c.l.b16 %v636
    %v823 = vunpack.c.h.b16 %v636
    %v824 = vunpack.c.l.b16 %v637
    %v825 = vunpack.c.h.b16 %v637
    %v826 = vunpack.c.l.b16 %v638
    %v827 = vunpack.c.h.b16 %v638
    %v828 = vunpack.c.l.b16 %v639
    %v829 = vunpack.c.h.b16 %v639
    %v830 = vunpack.c.l.b16 %v640
    %v831 = vunpack.c.h.b16 %v640
    %v832 = vunpack.c.l.b16 %v641
    %v833 = vunpack.c.h.b16 %v641
    %v834 = vunpack.c.l.b16 %v642
    %v835 = vunpack.c.h.b16 %v642
    %v836 = vunpack.c.l.b16 %v643
    %v837 = vunpack.c.h.b16 %v643
    %v838 = vunpack.c.l.b16 %v644
    %v839 = vunpack.c.h.b16 %v644
    %v840 = vunpack.c.l.b16 %v645
    %v841 = vunpack.c.h.b16 %v645
    %v842 = vunpack.c.l.b16 %v646
    %v843 = vunpack.c.h.b16 %v646
    %v844 = vunpack.c.l.b16 %v647
    %v845 = vunpack.c.h.b16 %v647
    %v846 = vunpack.c.l.b16 %v648
    %v847 = vunpack.c.h.b16 %v648
    %v848 = vunpack.c.l.b16 %v649
    %v849 = vunpack.c.h.b16 %v649
    %v850 = vunpack.c.l.b16 %v650
    %v851 = vunpack.c.h.b16 %v650
    %v852 = vunpack.c.l.b16 %v651
    %v853 = vunpack.c.h.b16 %v651
    %v854 = vunpack.c.l.b16 %v652
    %v855 = vunpack.c.h.b16 %v652
    %v856 = vunpack.c.l.b16 %v653
    %v857 = vunpack.c.h.b16 %v653
    %v858 = vpack.c.b16 %v732, %v730
    %v859 = vpack.c.b16 %v733, %v731
    %v860 = vpack.c.b16 %v736, %v734
    %v861 = vpack.c.b16 %v737, %v735
    %v862 = vpack.c.b16 %v740, %v738
    %v863 = vpack.c.b16 %v741, %v739
    %v864 = vpack.c.b16 %v744, %v742
    %v865 = vpack.c.b16 %v745, %v743
    %v866 = vpack.c.b16 %v748, %v746
    %v867 = vpack.c.b16 %v749, %v747
    %v868 = vpack.c.b16 %v752, %v750
    %v869 = vpack.c.b16 %v753, %v751
    %v870 = vpack.c.b16 %v756, %v754
    %v871 = vpack.c.b16 %v757, %v755
    %v872 = vpack.c.b16 %v760, %v758
    %v873 = vpack.c.b16 %v761, %v759
    %v874 = vpack.c.b16 %v764, %v762
    %v875 = vpack.c.b16 %v765, %v763
    %v876 = vpack.c.b16 %v768, %v766
    %v877 = vpack.c.b16 %v769, %v767
    %v878 = vpack.c.b16 %v772, %v770
    %v879 = vpack.c.b16 %v773, %v771
    %v880 = vpack.c.b16 %v776, %v774
    %v881 = vpack.c.b16 %v777, %v775
    %v882 = vpack.c.b16 %v780, %v778
    %v883 = vpack.c.b16 %v781, %v779
    %v884 = vpack.c.b16 %v784, %v782
    %v885 = vpack.c.b16 %v785, %v783
    %v886 = vpack.c.b16 %v788, %v786
    %v887 = vpack.c.b16 %v789, %v787
    %v888 = vpack.c.b16 %v792, %v790
    %v889 = vpack.c.b16 %v793, %v791
    %v890 = vpack.c.b16 %v796, %v794
    %v891 = vpack.c.b16 %v797, %v795
    %v892 = vpack.c.b16 %v800, %v798
    %v893 = vpack.c.b16 %v801, %v799
    %v894 = vpack.c.b16 %v804, %v802
    %v895 = vpack.c.b16 %v805, %v803
    %v896 = vpack.c.b16 %v808, %v806
    %v897 = vpack.c.b16 %v809, %v807
    %v898 = vpack.c.b16 %v812, %v810
    %v899 = vpack.c.b16 %v813, %v811
    %v900 = vpack.c.b16 %v816, %v814
    %v901 = vpack.c.b16 %v817, %v815
    %v902 = vpack.c.b16 %v820, %v818
    %v903 = vpack.c.b16 %v821, %v819
    %v904 = vpack.c.b16 %v824, %v822
    %v905 = vpack.c.b16 %v825, %v823
    %v906 = vpack.c.b16 %v828, %v826
    %v907 = vpack.c.b16 %v829, %v827
    %v908 = vpack.c.b16 %v832, %v830
    %v909 = vpack.c.b16 %v833, %v831
    %v910 = vpack.c.b16 %v836, %v834
    %v911 = vpack.c.b16 %v837, %v835
    %v912 = vpack.c.b16 %v840, %v838
    %v913 = vpack.c.b16 %v841, %v839
    %v914 = vpack.c.b16 %v844, %v842
    %v915 = vpack.c.b16 %v845, %v843
    %v916 = vpack.c.b16 %v848, %v846
    %v917 = vpack.c.b16 %v849, %v847
    %v918 = vpack.c.b16 %v852, %v850
    %v919 = vpack.c.b16 %v853, %v851
    %v920 = vpack.c.b16 %v856, %v854
    %v921 = vpack.c.b16 %v857, %v855
    %986 = vmatprep.subr.bf16.mxu0 %v873
    %987 = vmatpush1.bf16.msra.mxu0 %v872
    %988 = vmatprep.subr.bf16.mxu0 %v871
    %989 = vmatpush1.bf16.msra.mxu0 %v870
    %990 = vmatprep.subr.bf16.mxu0 %v869
    %991 = vmatpush1.bf16.msra.mxu0 %v868
    %992 = vmatprep.subr.bf16.mxu0 %v867
    %993 = vmatpush1.bf16.msra.mxu0 %v866
    %994 = vmatprep.subr.bf16.mxu0 %v865
    %995 = vmatpush1.bf16.msra.mxu0 %v864
    %996 = vmatprep.subr.bf16.mxu0 %v863
    %997 = vmatpush1.bf16.msra.mxu0 %v862
    %998 = vmatprep.subr.bf16.mxu0 %v861
    %999 = vmatpush1.bf16.msra.mxu0 %v860
    %1000 = vmatprep.subr.bf16.mxu0 %v859
    %1001 = vmatpush1.bf16.msra.mxu0 %v858
    %1002 = vmatprep.subr.bf16.mxu0 %v889
    %1003 = vmatpush2.bf16.msra.mxu0 %v888
    %1004 = vmatprep.subr.bf16.mxu0 %v887
    %1005 = vmatpush2.bf16.msra.mxu0 %v886
    %1006 = vmatprep.subr.bf16.mxu0 %v885
    %1007 = vmatpush2.bf16.msra.mxu0 %v884
    %1008 = vmatprep.subr.bf16.mxu0 %v883
    %1009 = vmatpush2.bf16.msra.mxu0 %v882
    %1010 = vmatprep.subr.bf16.mxu0 %v881
    %1011 = vmatpush2.bf16.msra.mxu0 %v880
    %1012 = vmatprep.subr.bf16.mxu0 %v879
    %1013 = vmatpush2.bf16.msra.mxu0 %v878
    %1014 = vmatprep.subr.bf16.mxu0 %v877
    %1015 = vmatpush2.bf16.msra.mxu0 %v876
    %1016 = vmatprep.subr.bf16.mxu0 %v875
    %1017 = vmatpush2.bf16.msra.mxu0 %v874
    %1018 = vmatprep.mubr.bf16.mxu0 %v587
    %1019 = vmatmul.mubr.bf16.gmra.mxu0 %v586
    %v1020 = vpop.f32.mrf.mxu0
    %v1021 = vadd.f32 %v659, %v1020
    %v1022 = vpop.f32.mrf.mxu0
    %v1023 = vadd.f32 %v663, %v1022
    %v1024 = vpop.f32.mrf.mxu0
    %v1025 = vpop.f32.mrf.mxu0
    %1026 = vdwg.mxu0
    %1027 = vmatprep.subr.bf16.mxu0 %v905
    %1028 = vmatpush1.bf16.msra.mxu0 %v904
    %1029 = vmatprep.subr.bf16.mxu0 %v903
    %1030 = vmatpush1.bf16.msra.mxu0 %v902
    %1031 = vmatprep.subr.bf16.mxu0 %v901
    %1032 = vmatpush1.bf16.msra.mxu0 %v900
    %1033 = vmatprep.subr.bf16.mxu0 %v899
    %1034 = vmatpush1.bf16.msra.mxu0 %v898
    %1035 = vmatprep.subr.bf16.mxu0 %v897
    %1036 = vmatpush1.bf16.msra.mxu0 %v896
    %1037 = vmatprep.subr.bf16.mxu0 %v895
    %1038 = vmatpush1.bf16.msra.mxu0 %v894
    %1039 = vmatprep.subr.bf16.mxu0 %v893
    %1040 = vmatpush1.bf16.msra.mxu0 %v892
    %1041 = vmatprep.subr.bf16.mxu0 %v891
    %1042 = vmatpush1.bf16.msra.mxu0 %v890
    %1043 = vmatprep.subr.bf16.mxu0 %v921
    %1044 = vmatpush2.bf16.msra.mxu0 %v920
    %1045 = vmatprep.subr.bf16.mxu0 %v919
    %1046 = vmatpush2.bf16.msra.mxu0 %v918
    %1047 = vmatprep.subr.bf16.mxu0 %v917
    %1048 = vmatpush2.bf16.msra.mxu0 %v916
    %1049 = vmatprep.subr.bf16.mxu0 %v915
    %1050 = vmatpush2.bf16.msra.mxu0 %v914
    %1051 = vmatprep.subr.bf16.mxu0 %v913
    %1052 = vmatpush2.bf16.msra.mxu0 %v912
    %1053 = vmatprep.subr.bf16.mxu0 %v911
    %1054 = vmatpush2.bf16.msra.mxu0 %v910
    %1055 = vmatprep.subr.bf16.mxu0 %v909
    %1056 = vmatpush2.bf16.msra.mxu0 %v908
    %1057 = vmatprep.subr.bf16.mxu0 %v907
    %1058 = vmatpush2.bf16.msra.mxu0 %v906
    %1059 = vmatprep.mubr.bf16.mxu0 %v589
    %1060 = vmatmul.mubr.bf16.gmra.mxu0 %v588
    %v1061 = vpop.f32.mrf.mxu0
    %v1062 = vadd.f32 %v1021, %v1061
    %v1063 = vpop.f32.mrf.mxu0
    %v1064 = vadd.f32 %v1023, %v1063
    %v1065 = vpop.f32.mrf.mxu0
    %v1066 = vpop.f32.mrf.mxu0
    %1067 = vdwg.mxu0
    %v1068 = vmul.f32 %v1062, %v1062
    %v1069 = vmul.f32 %v1064, %v1064
    %v1070 = vadd.f32 %v1068, %v1069
    %1071 = vadd.xlane.f32.xlu0 %v1070
    %v1072 = vpop.xlane.xlu0 %1071
    %v1073 = vmax.f32 %v1072, 1e-24
    %v1074 = vrsqrt.pop %v1073
    %v1075 = vmul.f32 %v1062, %v1074
    %v1076 = vmul.f32 %v1064, %v1074
    %v1077 = vpack.c.bf16 %v1075, %v1075
    %v1078 = vpack.c.bf16 %v1076, %v1076
    %v1081 = vunpack.c.l.b16 %v1077
    %v1082 = vunpack.c.l.b16 %v1078
    %v1083 = vpack.c.b16 %v1082, %v1081
    %1085 = vst [vmem:[#allocation11] sm:$0xff] %v1083
    // Predicated region
    $region42: #{tpu_custom_call.1} parent=1 // pred_check
      _
    $region43: #{tpu_custom_call.1} parent=1 // pred_check_branch
      %1087 = sbr.rel (0) target = $region45
    $region44: #{tpu_custom_call.1} parent=1 // pred_region
      %s1089 = ssub.s32 128, 128
      %1090 = vsyncadd [#allocation4], %s1089
      %s1092 = sshll.u32 [#allocation10], 4
      %s1093 = int_to_ptr.vmem [resolvable:$true] %s1092
      %1095 = dma.vmem_to_hbm [thread:$0]  %s1093, 128, %s6, [#allocation4]
    $region45: #{tpu_custom_call.1} parent=1 // pred_fallthru
      _
    // Predicated region
    $region46: #{tpu_custom_call.1} parent=1 // pred_check
      _
    $region47: #{tpu_custom_call.1} parent=1 // pred_check_branch
      %1097 = sbr.rel (0) target = $region49
    $region48: #{tpu_custom_call.1} parent=1 // pred_region
      %s1099 = ssub.s32 128, 128
      %1100 = vsyncadd [#allocation12], %s1099
      %s1102 = sshll.u32 [#allocation11], 4
      %s1103 = int_to_ptr.vmem [resolvable:$true] %s1102
      %1105 = dma.vmem_to_hbm [thread:$0]  %s1103, 128, %s7, [#allocation12]
    $region49: #{tpu_custom_call.1} parent=1 // pred_fallthru
      _
    // Predicated region
    $region50: #{tpu_custom_call.1} parent=1 // pred_check
      _
    $region51: #{tpu_custom_call.1} parent=1 // pred_check_branch
      %1107 = sbr.rel (0) target = $region53
    $region52: #{tpu_custom_call.1} parent=1 // pred_region
      %1108 = dma.done [#allocation4], 128
    $region53: #{tpu_custom_call.1} parent=1 // pred_fallthru
      _
    // Predicated region
    $region54: #{tpu_custom_call.1} parent=1 // pred_check
      _
    $region55: #{tpu_custom_call.1} parent=1 // pred_check_branch
      %1110 = sbr.rel (0) target = $region57
    $region56: #{tpu_custom_call.1} parent=1 // pred_region
      %1111 = dma.done [#allocation12], 128
    $region57: #{tpu_custom_call.1} parent=1 // pred_fallthru
      _
    %1112 = vsyncpa [#allocation3], 1
    %1113 = vsyncpa [#allocation6], 1
    %1114 = vsyncpa [#allocation9], 1
    %1115 = vsyncpa [#allocation4], 1
    %1116 = vsyncpa [#allocation12], 1

</llo_original>
